<compile_context>
chip_gen: v5e
topology: v5e:2x2
jax: 0.10.0
libtpu: 0.0.40
codegen_flags: <defaults>
</compile_context>

<pallas_src>
import functools

import jax
import jax.numpy as jnp
from jax.experimental import pallas as pl
from jax.experimental.pallas import tpu as pltpu


# --------------------------------------------------------------------------
# helpers
# --------------------------------------------------------------------------
def _round_up(x, m):
    return ((x + m - 1) // m) * m


# --------------------------------------------------------------------------
# Kernel 1: L1 matcher cost.
#   grid = (N_tiles, HW_chunks); output (lane-dense, 128-padded) is resident
#   across the HW reduction axis; gt is a single resident VMEM block.
# --------------------------------------------------------------------------
def _l1_cost_kernel(pred_ref, gt_ref, cost_ref, *, n_gt, chunk, ng_pad):
    c = pl.program_id(1)

    @pl.when(c == 0)
    def _():
        cost_ref[...] = jnp.zeros_like(cost_ref)

    start = pl.multiple_of(c * chunk, 128)
    p = pred_ref[...].astype(jnp.float32)                       # (n_tile, chunk)
    lane = jax.lax.broadcasted_iota(jnp.int32, (1, ng_pad), 1)  # lane index

    acc = jnp.zeros((p.shape[0], ng_pad), jnp.float32)
    for k in range(n_gt):                                       # n_gt small & static
        g = gt_ref[pl.ds(k, 1), pl.ds(start, chunk)].astype(jnp.float32)  # (1, chunk)
        d = jnp.sum(jnp.abs(p - g), axis=-1, keepdims=True)     # (n_tile, 1)
        # place column k via a lane one-hot multiply: pure VPU, no masked store
        acc = acc + d * (lane == k).astype(jnp.float32)
    cost_ref[...] += acc


def _l1_cost(pred_flat, gt_flat, *, chunk_cap=4096, n_cap=256):
    n, hw = pred_flat.shape
    n_gt = gt_flat.shape[0]

    hw_pad = _round_up(hw, 128)
    chunk = min(hw_pad, chunk_cap)
    while hw_pad % chunk:
        chunk -= 128

    # choose n_tile so that row padding stays small (<= 7 rows)
    n_tiles = -(-n // n_cap)
    n_tile = _round_up(-(-n // n_tiles), 8)
    n_pad = n_tile * n_tiles

    ng_pad = _round_up(max(n_gt, 128), 128)      # lane-dense cost output

    # Zero padding contributes |0 - 0| = 0 along HW; padded proposal rows are
    # sliced off before the assignment.  Pad only when actually needed.
    # TODO(synk): for hw % 128 != 0 an in-kernel tail mask would avoid this
    # full-array pad copy entirely.
    if (n_pad, hw_pad) != (n, hw):
        pred_p = jnp.pad(pred_flat, ((0, n_pad - n), (0, hw_pad - hw)))
    else:
        pred_p = pred_flat
    gt_p = gt_flat if hw_pad == hw else jnp.pad(gt_flat, ((0, 0), (0, hw_pad - hw)))

    cost = pl.pallas_call(
        functools.partial(_l1_cost_kernel, n_gt=n_gt, chunk=chunk, ng_pad=ng_pad),
        out_shape=jax.ShapeDtypeStruct((n_pad, ng_pad), jnp.float32),
        grid=(n_pad // n_tile, hw_pad // chunk),
        in_specs=[
            pl.BlockSpec((n_tile, chunk), lambda i, c: (i, c)),
            # constant block index -> gt is DMA'd once and stays VMEM-resident
            pl.BlockSpec((n_gt, hw_pad), lambda i, c: (0, 0)),
        ],
        out_specs=pl.BlockSpec((n_tile, ng_pad), lambda i, c: (i, 0)),
        compiler_params=pltpu.CompilerParams(
            dimension_semantics=("parallel", "arbitrary")),
    )(pred_p, gt_p)
    return cost[:n, :n_gt]


# --------------------------------------------------------------------------
# Kernel 2: fused matched-pair losses over ALL K pairs in one step.
#   Inputs are pre-gathered (K, H, W) / (K, H) blocks (K is tiny).
#   Outputs: row_loss2 (K, H, W), kps/row L1 numerators as SMEM scalars.
# --------------------------------------------------------------------------
def _matched_loss_kernel(mask_ref, kps_ref, gt_rows2_ref, gt_reg_ref,
                         gt_reg_mask_ref, gt_rows_ref, gt_row_masks_ref,
                         row_loss2_ref, kps_num_ref, row_num_ref):
    m = mask_ref[...].astype(jnp.float32)                        # (K, H, W)

    # ---- row_loss2: nn.L1Loss(reduction='none'), from the same mask block ----
    row_loss2_ref[...] = jnp.abs(m - gt_rows2_ref[...].astype(jnp.float32))

    # ---- kps_loss numerator: |kps*m - gt*m| summed (== |(kps - gt) * m|) ----
    rm = gt_reg_mask_ref[...].astype(jnp.float32)
    kps_num_ref[0, 0] = jnp.sum(
        jnp.abs((kps_ref[...].astype(jnp.float32)
                 - gt_reg_ref[...].astype(jnp.float32)) * rm))

    # ---- row_loss numerator: softmax-expected column position (+0.5) ----
    mmax = jnp.max(m, axis=-1, keepdims=True)
    e = jnp.exp(m - mmax)
    p = e / jnp.sum(e, axis=-1, keepdims=True)                   # exact division
    pos = jax.lax.broadcasted_iota(jnp.int32, m.shape, 2).astype(jnp.float32)
    row_pos = jnp.sum(pos * p, axis=-1) + 0.5                    # (K, H)
    rowm = gt_row_masks_ref[...].astype(jnp.float32)
    row_num_ref[0, 0] = jnp.sum(
        jnp.abs((row_pos - gt_rows_ref[...].astype(jnp.float32)) * rowm))


def _matched_losses(mask_sel, kps_sel, gt_rows2, gt_reg, gt_reg_mask,
                    gt_rows, gt_row_masks):
    K, H, W = mask_sel.shape
    vmem = pl.BlockSpec(memory_space=pltpu.MemorySpace.VMEM)
    smem = pl.BlockSpec(memory_space=pltpu.MemorySpace.SMEM)
    return pl.pallas_call(
        _matched_loss_kernel,
        out_shape=(
            jax.ShapeDtypeStruct((K, H, W), jnp.float32),
            jax.ShapeDtypeStruct((1, 1), jnp.float32),
            jax.ShapeDtypeStruct((1, 1), jnp.float32),
        ),
        in_specs=[vmem] * 7,
        out_specs=(vmem, smem, smem),
    )(mask_sel, kps_sel, gt_rows2, gt_reg, gt_reg_mask, gt_rows, gt_row_masks)


# --------------------------------------------------------------------------
# Module wrapper
# --------------------------------------------------------------------------
class CondLaneLoss:
    def __init__(self, weights, num_lane_cls):
        self.hm_weight = weights.get('hm_weight', 1.0)
        self.kps_weight = weights.get('kps_weight', 0.4)
        self.row_weight = weights.get('row_weight', 1.0)
        self.range_weight = weights.get('range_weight', 1.0)
        self.coordinate_weight = weights.get('coordinate_weight', 0.1)
        self.class_weight = weights.get('class_weight', 0.1)
        self.row_weight2 = weights.get('row_weight2', 1.0)
        self.num_lane_cls = num_lane_cls

    def __call__(self, poses, output, meta, **kwargs):
        mask_class, kps, mask, lane_range = output[:4]
        gt_rows2 = kwargs['gt_rows2']
        gt_reg = kwargs['gt_reg']
        gt_reg_mask = kwargs['gt_reg_mask']
        gt_rows = kwargs['gt_rows']
        gt_row_masks = kwargs['gt_row_masks']
        gt_ranges = kwargs['gt_ranges']

        B, N, H, W = mask.shape
        if B != 1:
            raise ValueError("CondLaneLoss assumes batch size 1 (like the "
                             "original module's view(1, -1, HW)).")
        HW = H * W
        Kt = gt_rows2.shape[1]

        mask_flat = mask.reshape(N, HW)
        gt_rows2_flat = gt_rows2.reshape(Kt, HW)

        # ---------------- matcher cost (Pallas) + greedy bijective assignment -------
        cost = _l1_cost(mask_flat, gt_rows2_flat)               # (N, Kt) f32
        # TODO(synk): exact HungarianMatcher (optimal bipartite assignment) has no
        # clean Pallas/JAX equivalent; greedy global-minimum bijective assignment
        # over the L1 cost is used instead.
        big = jnp.float32(1e30)
        work = cost
        src_idx = jnp.zeros((Kt,), jnp.int32)
        for _ in range(Kt):                                      # Kt is small & static
            flat = jnp.argmin(work)
            r = (flat // Kt).astype(jnp.int32)
            t = (flat % Kt).astype(jnp.int32)
            src_idx = src_idx.at[t].set(r)
            work = work.at[r, :].set(big).at[:, t].set(big)
        tgt_idx = jnp.arange(Kt, dtype=jnp.int32)

        # ---------------- gather matched proposal rows (K tiny -> plain JAX) --------
        mask_sel = jnp.take(mask[0], src_idx, axis=0)            # (Kt, H, W)
        kps_sel = jnp.take(kps[0], src_idx, axis=0)              # (Kt, H, W)

        # ---------------- fused row_loss2 / kps / row losses (Pallas, single step) ---
        row_loss2_sel, kps_num, row_num = _matched_losses(
            mask_sel, kps_sel,
            gt_rows2[0], gt_reg[0], gt_reg_mask[0],
            gt_rows[0], gt_row_masks[0])

        # denominators (mask.bool().float().sum()) do not depend on the gather
        kps_den = jnp.sum((gt_reg_mask[0] != 0).astype(jnp.float32))
        row_den = jnp.sum((gt_row_masks[0] != 0).astype(jnp.float32))
        kps_loss = kps_num[0, 0] / (kps_den + 1e-4)
        row_loss = row_num[0, 0] / (row_den + 1e-4)
        row_loss2 = row_loss2_sel.reshape(1, Kt, H, W)

        # ---------------- 2-class cross-entropies in plain JAX ----------------------
        class_logits = mask_class.reshape(B * N, 2).astype(jnp.float32)
        target_classes = jnp.zeros((B * N,), jnp.int32).at[src_idx].set(1)
        logz = jax.nn.log_softmax(class_logits, axis=-1)
        class_loss = -jnp.mean(
            jnp.sum(jax.nn.one_hot(target_classes, 2, dtype=jnp.float32) * logz,
                    axis=-1))

        range_sel = lane_range[src_idx].astype(jnp.float32)      # (K, 2, H)
        gt_ranges_sel = gt_ranges[tgt_idx]                       # (K, H) int
        rlogz = jax.nn.log_softmax(range_sel, axis=1)
        r_oh = jax.nn.one_hot(gt_ranges_sel, 2, axis=1, dtype=jnp.float32)
        range_loss = -jnp.mean(jnp.sum(r_oh * rlogz, axis=1))

        losses = {}
        if self.class_weight > 0:
            losses['class_loss'] = self.class_weight * class_loss
        if self.kps_weight:
            losses['kps_loss'] = self.kps_weight * kps_loss
        if self.row_weight > 0:
            losses['row_loss'] = self.row_weight * row_loss
        if self.row_weight2 > 0:
            # matches nn.L1Loss(reduction='none') on (1, K, H, W)
            losses['row_loss2'] = self.row_weight2 * row_loss2
        if self.range_weight > 0:
            losses['range_loss'] = self.range_weight * range_loss
        return losses


# --------------------------------------------------------------------------
# Example run
# --------------------------------------------------------------------------
if __name__ == "__main__":
    key = jax.random.PRNGKey(0)
    N, Kt, H, W = 8, 4, 8, 16      # proposals, gt lanes, rows, cols
    ks = jax.random.split(key, 10)

    mask_class = jax.random.normal(ks[0], (1, N, 2), jnp.float32)
    kps = jax.random.normal(ks[1], (1, N, H, W), jnp.float32)
    mask = jax.random.normal(ks[2], (1, N, H, W), jnp.float32)
    lane_range = jax.random.normal(ks[3], (N, 2, H), jnp.float32)

    gt_rows2 = jax.random.uniform(ks[4], (1, Kt, H, W), jnp.float32)
    gt_reg = jax.random.normal(ks[5], (1, Kt, H, W), jnp.float32)
    gt_reg_mask = (jax.random.uniform(ks[6], (1, Kt, H, W)) > 0.5).astype(jnp.float32)
    gt_rows = jax.random.uniform(ks[7], (1, Kt, H), jnp.float32,
                                 minval=0.0, maxval=float(W - 1))
    gt_row_masks = (jax.random.uniform(ks[8], (1, Kt, H)) > 0.3).astype(jnp.float32)
    gt_ranges = jax.random.bernoulli(ks[9], 0.5, (Kt, H)).astype(jnp.int32)

    loss_mod = CondLaneLoss(weights={}, num_lane_cls=1)
    losses = loss_mod(
        None, (mask_class, kps, mask, lane_range), None,
        gt_rows2=gt_rows2, gt_reg=gt_reg, gt_reg_mask=gt_reg_mask,
        gt_rows=gt_rows, gt_row_masks=gt_row_masks, gt_ranges=gt_ranges,
    )
    jax.block_until_ready(losses)
    print("KERNEL_OK")
</pallas_src>

<mosaic_0001>
module attributes {stable_mosaic.version = 11 : i64} {
  func.func @_l1_cost_kernel(%arg0: i32, %arg1: i32, %arg2: memref<8x128xf32, #tpu.memory_space<vmem>>, %arg3: memref<4x128xf32, #tpu.memory_space<vmem>>, %arg4: memref<8x128xf32, #tpu.memory_space<vmem>>) attributes {dimension_semantics = [#tpu.dimension_semantics<parallel>, #tpu.dimension_semantics<arbitrary>], iteration_bounds = array<i64: 1, 1>, scalar_prefetch = 0 : i64, scratch_operands = 0 : i64, tpu.core_type = #tpu.core_type<tc>, window_params = [{transform_indices = @transform_0, window_bounds = array<i64: 8, 128>}, {pipeline_mode = #tpu.pipeline_mode<synchronous>, transform_indices = @transform_1, window_bounds = array<i64: 4, 128>}, {transform_indices = @transform_2, window_bounds = array<i64: 8, 128>}]} {
    %c0_i32 = arith.constant 0 : i32
    %0 = arith.cmpi eq, %arg1, %c0_i32 : i32
    %1 = arith.extui %0 : i1 to i32
    %c0_i32_0 = arith.constant 0 : i32
    %2 = arith.cmpi ne, %1, %c0_i32_0 : i32
    scf.if %2 {
      %cst_12 = arith.constant 0.000000e+00 : f32
      %71 = vector.broadcast %cst_12 : f32 to vector<8x128xf32>
      %c0_13 = arith.constant 0 : index
      %c0_14 = arith.constant 0 : index
      %72 = vector.load %arg4[%c0_13, %c0_14] : memref<8x128xf32, #tpu.memory_space<vmem>>, vector<8x128xf32>
      tpu.vector_store %arg4[%c0_13, %c0_14], %71 {strides = array<i32>} : memref<8x128xf32, #tpu.memory_space<vmem>>, vector<8x128xf32>,
    } else {
    }
    %c128_i32 = arith.constant 128 : i32
    %3 = arith.muli %arg1, %c128_i32 : i32
    %4 = tpu.assume_multiple %3, 128 : i32
    %c0 = arith.constant 0 : index
    %c0_1 = arith.constant 0 : index
    %5 = vector.load %arg2[%c0, %c0_1] : memref<8x128xf32, #tpu.memory_space<vmem>>, vector<8x128xf32>
    %6 = tpu.iota {dimensions = array<i32: 1>} : vector<1x128xi32>
    %cst = arith.constant 0.000000e+00 : f32
    %7 = vector.broadcast %cst : f32 to vector<8x128xf32>
    %c0_2 = arith.constant 0 : index
    %8 = arith.index_cast %4 : i32 to index
    %9 = vector.load %arg3[%c0_2, %8] : memref<4x128xf32, #tpu.memory_space<vmem>>, vector<1x128xf32>
    %10 = vector.broadcast %9 : vector<1x128xf32> to vector<8x128xf32>
    %11 = arith.subf %5, %10 : vector<8x128xf32>
    %12 = math.absf %11 : vector<8x128xf32>
    %cst_3 = arith.constant dense<0.000000e+00> : vector<8xf32>
    %13 = vector.multi_reduction <add>, %12, %cst_3 [1] : vector<8x128xf32> to vector<8xf32>
    %14 = vector.shape_cast %13 : vector<8xf32> to vector<8x1xf32>
    %c0_i32_4 = arith.constant 0 : i32
    %15 = vector.broadcast %c0_i32_4 : i32 to vector<1x128xi32>
    %16 = arith.cmpi eq, %6, %15 : vector<1x128xi32>
    %17 = arith.extui %16 : vector<1x128xi1> to vector<1x128xi32>
    %18 = arith.sitofp %17 : vector<1x128xi32> to vector<1x128xf32>
    %19 = vector.broadcast %14 : vector<8x1xf32> to vector<8x128xf32>
    %20 = vector.broadcast %18 : vector<1x128xf32> to vector<8x128xf32>
    %21 = arith.mulf %19, %20 : vector<8x128xf32>
    %22 = arith.addf %7, %21 : vector<8x128xf32>
    %c1 = arith.constant 1 : index
    %23 = arith.index_cast %4 : i32 to index
    %24 = vector.load %arg3[%c1, %23] : memref<4x128xf32, #tpu.memory_space<vmem>>, vector<1x128xf32>
    %25 = vector.broadcast %24 : vector<1x128xf32> to vector<8x128xf32>
    %26 = arith.subf %5, %25 : vector<8x128xf32>
    %27 = math.absf %26 : vector<8x128xf32>
    %cst_5 = arith.constant dense<0.000000e+00> : vector<8xf32>
    %28 = vector.multi_reduction <add>, %27, %cst_5 [1] : vector<8x128xf32> to vector<8xf32>
    %29 = vector.shape_cast %28 : vector<8xf32> to vector<8x1xf32>
    %c1_i32 = arith.constant 1 : i32
    %30 = vector.broadcast %c1_i32 : i32 to vector<1x128xi32>
    %31 = arith.cmpi eq, %6, %30 : vector<1x128xi32>
    %32 = arith.extui %31 : vector<1x128xi1> to vector<1x128xi32>
    %33 = arith.sitofp %32 : vector<1x128xi32> to vector<1x128xf32>
    %34 = vector.broadcast %29 : vector<8x1xf32> to vector<8x128xf32>
    %35 = vector.broadcast %33 : vector<1x128xf32> to vector<8x128xf32>
    %36 = arith.mulf %34, %35 : vector<8x128xf32>
    %37 = arith.addf %22, %36 : vector<8x128xf32>
    %c2 = arith.constant 2 : index
    %38 = arith.index_cast %4 : i32 to index
    %39 = vector.load %arg3[%c2, %38] : memref<4x128xf32, #tpu.memory_space<vmem>>, vector<1x128xf32>
    %40 = vector.broadcast %39 : vector<1x128xf32> to vector<8x128xf32>
    %41 = arith.subf %5, %40 : vector<8x128xf32>
    %42 = math.absf %41 : vector<8x128xf32>
    %cst_6 = arith.constant dense<0.000000e+00> : vector<8xf32>
    %43 = vector.multi_reduction <add>, %42, %cst_6 [1] : vector<8x128xf32> to vector<8xf32>
    %44 = vector.shape_cast %43 : vector<8xf32> to vector<8x1xf32>
    %c2_i32 = arith.constant 2 : i32
    %45 = vector.broadcast %c2_i32 : i32 to vector<1x128xi32>
    %46 = arith.cmpi eq, %6, %45 : vector<1x128xi32>
    %47 = arith.extui %46 : vector<1x128xi1> to vector<1x128xi32>
    %48 = arith.sitofp %47 : vector<1x128xi32> to vector<1x128xf32>
    %49 = vector.broadcast %44 : vector<8x1xf32> to vector<8x128xf32>
    %50 = vector.broadcast %48 : vector<1x128xf32> to vector<8x128xf32>
    %51 = arith.mulf %49, %50 : vector<8x128xf32>
    %52 = arith.addf %37, %51 : vector<8x128xf32>
    %c3 = arith.constant 3 : index
    %53 = arith.index_cast %4 : i32 to index
    %54 = vector.load %arg3[%c3, %53] : memref<4x128xf32, #tpu.memory_space<vmem>>, vector<1x128xf32>
    %55 = vector.broadcast %54 : vector<1x128xf32> to vector<8x128xf32>
    %56 = arith.subf %5, %55 : vector<8x128xf32>
    %57 = math.absf %56 : vector<8x128xf32>
    %cst_7 = arith.constant dense<0.000000e+00> : vector<8xf32>
    %58 = vector.multi_reduction <add>, %57, %cst_7 [1] : vector<8x128xf32> to vector<8xf32>
    %59 = vector.shape_cast %58 : vector<8xf32> to vector<8x1xf32>
    %c3_i32 = arith.constant 3 : i32
    %60 = vector.broadcast %c3_i32 : i32 to vector<1x128xi32>
    %61 = arith.cmpi eq, %6, %60 : vector<1x128xi32>
    %62 = arith.extui %61 : vector<1x128xi1> to vector<1x128xi32>
    %63 = arith.sitofp %62 : vector<1x128xi32> to vector<1x128xf32>
    %64 = vector.broadcast %59 : vector<8x1xf32> to vector<8x128xf32>
    %65 = vector.broadcast %63 : vector<1x128xf32> to vector<8x128xf32>
    %66 = arith.mulf %64, %65 : vector<8x128xf32>
    %67 = arith.addf %52, %66 : vector<8x128xf32>
    %c0_8 = arith.constant 0 : index
    %c0_9 = arith.constant 0 : index
    %68 = vector.load %arg4[%c0_8, %c0_9] : memref<8x128xf32, #tpu.memory_space<vmem>>, vector<8x128xf32>
    %69 = arith.addf %68, %67 : vector<8x128xf32>
    %c0_10 = arith.constant 0 : index
    %c0_11 = arith.constant 0 : index
    %70 = vector.load %arg4[%c0_10, %c0_11] : memref<8x128xf32, #tpu.memory_space<vmem>>, vector<8x128xf32>
    tpu.vector_store %arg4[%c0_10, %c0_11], %69 {strides = array<i32>} : memref<8x128xf32, #tpu.memory_space<vmem>>, vector<8x128xf32>,
    return
  }
  func.func @transform_0(%arg0: i32, %arg1: i32) -> (i32, i32) {
    %c0_i32 = arith.constant 0 : i32
    return %arg0, %arg1 : i32, i32
  }
  func.func @transform_1(%arg0: i32, %arg1: i32) -> (i32, i32) {
    %c0_i32 = arith.constant 0 : i32
    %c0_i32_0 = arith.constant 0 : i32
    %c0_i32_1 = arith.constant 0 : i32
    return %c0_i32, %c0_i32_0 : i32, i32
  }
  func.func @transform_2(%arg0: i32, %arg1: i32) -> (i32, i32) {
    %c0_i32 = arith.constant 0 : i32
    %c0_i32_0 = arith.constant 0 : i32
    return %arg0, %c0_i32 : i32, i32
  }
}

</mosaic_0001>

<llo_original>
// kernel: tpu_custom_call.1
$region0: #{tpu_custom_call.1}
  #allocation0 [shape = 'u32[]', space=smem, size = 0x4, offset = 0x4, fixed_abs, tag = 'smem constant byte address 0x4 - core index']
  #allocation1 [shape = 'u32[72,128]{1,0:T(1,128)}', space=vmem, size = 0x9000, scoped, tag = 'internal scratch']
  %s0 = inlined_call_operand.hbm [shape: f32[8,128], index: 0, kind: input, shape index: {}]
  %s1 = inlined_call_operand.hbm [shape: f32[4,128], index: 1, kind: input, shape index: {}]
  %s2 = inlined_call_operand.hbm [shape: f32[8,128], index: 2, kind: output, shape index: {}]
  %s3 = sld [smem:[#allocation0]]
  $region30: #{tpu_custom_call.1} parent=0
    _
  %s5 = ssub.s32 1, %s3
  %s6 = scalar_select 0, %s5, %s3
  $region1: #{tpu_custom_call.1} parent=0
    #allocation2 [shape = 'u8[4096]{0}', space=vmem, size = 0x1000, scoped, tag = 'input window, operand 0, single buffered']
    #allocation3 [shape = 's32[1]{0}', space=sflag, size = 0x4, scoped, tag = 'scoped memory for tpu_custom_call.1']
    #allocation4 [shape = 's32[1]{0}', space=sflag, size = 0x4, scoped, tag = 'scoped memory for tpu_custom_call.1']
    #allocation5 [shape = 'u8[2048]{0}', space=vmem, size = 0x800, scoped, tag = 'input window, operand 1, single buffered']
    #allocation6 [shape = 's32[1]{0}', space=sflag, size = 0x4, scoped, tag = 'scoped memory for tpu_custom_call.1']
    #allocation7 [shape = 'u8[4096]{0}', space=vmem, size = 0x1000, scoped, tag = 'output window, operand 0, single buffered']
    %7 = vsyncpa [#allocation3], 0
    %8 = vsyncpa [#allocation6], 0
    %9 = vsyncpa [#allocation4], 0
    // Predicated region
    $region2: #{tpu_custom_call.1} parent=1 // pred_check
      _
    $region3: #{tpu_custom_call.1} parent=1 // pred_check_branch
      %11 = sbr.rel (0) target = $region5
    $region4: #{tpu_custom_call.1} parent=1 // pred_region
      %13 = vsyncadd [#allocation3], 0
      %s15 = sshll.u32 %s0, 4
      %s16 = int_to_ptr.hbm [resolvable:$true] %s15
      %s17 = sshll.u32 [#allocation2], 4
      %s18 = int_to_ptr.vmem [resolvable:$true] %s17
      %20 = dma.hbm_to_vmem [thread:$0]  %s16, 128, %s18, [#allocation3]
    $region5: #{tpu_custom_call.1} parent=1 // pred_fallthru
      _
    // Predicated region
    $region6: #{tpu_custom_call.1} parent=1 // pred_check
      _
    $region7: #{tpu_custom_call.1} parent=1 // pred_check_branch
      %22 = sbr.rel (0) target = $region9
    $region8: #{tpu_custom_call.1} parent=1 // pred_region
      %24 = vsyncadd [#allocation6], 0
      %s26 = sshll.u32 %s1, 4
      %s27 = int_to_ptr.hbm [resolvable:$true] %s26
      %s28 = sshll.u32 [#allocation5], 4
      %s29 = int_to_ptr.vmem [resolvable:$true] %s28
      %31 = dma.hbm_to_vmem [thread:$0]  %s27, 64, %s29, [#allocation6]
    $region9: #{tpu_custom_call.1} parent=1 // pred_fallthru
      _
    // Predicated region
    $region10: #{tpu_custom_call.1} parent=1 // pred_check
      _
    $region11: #{tpu_custom_call.1} parent=1 // pred_check_branch
      %33 = sbr.rel (0) target = $region13
    $region12: #{tpu_custom_call.1} parent=1 // pred_region
      %35 = dma.done [#allocation3], 128
    $region13: #{tpu_custom_call.1} parent=1 // pred_fallthru
      _
    // Predicated region
    $region14: #{tpu_custom_call.1} parent=1 // pred_check
      _
    $region15: #{tpu_custom_call.1} parent=1 // pred_check_branch
      %37 = sbr.rel (0) target = $region17
    $region16: #{tpu_custom_call.1} parent=1 // pred_region
      %39 = dma.done [#allocation6], 64
    $region17: #{tpu_custom_call.1} parent=1 // pred_fallthru
      _
    %p40 = scmp.eq.s32.totalorder 0, 0
    // Predicated region
    $region18: #{tpu_custom_call.1} parent=1 // pred_check
      %p41 = pneg %p40
    $region19: #{tpu_custom_call.1} parent=1 // pred_check_branch
      %43 = sbr.rel (%p41) target = $region21
    $region20: #{tpu_custom_call.1} parent=1 // pred_region
      %44 = vst [vmem:[#allocation7] sm:$0xff] 0.0
    $region21: #{tpu_custom_call.1} parent=1 // pred_fallthru
      _
    %s45 = smul.u32 0, 128
    %v46 = vld [vmem:[#allocation2] sm:$0xff]
    %v47 = vlaneseq
    %v48 = vand.u32 %v47, 127
    %s49 = sshra.s32 %s45, 7
    %s50 = sand.u32 %s45, 127
    %s51 = scalar_lea.vmem [#allocation5], %s49
    %v52 = vld [vmem:[%s51] sm:$0x1]
    %v53 = vperm.slane %v52, 0
    %v54 = vsub.f32 %v46, %v53
    %v55 = vand.u32 2147483647, %v54
    %56 = vadd.xlane.f32.xlu0 %v55
    %v57 = vpop.xlane.xlu0 %56
    %vm58 = vcmp.eq.s32.totalorder %v48, 0
    %v59 = vsel %vm58, 1, 0
    %v60 = vcvt.s32.f32 %v59
    %v61 = vmul.f32 %v57, %v60
    %v62 = vadd.f32 %v61, 0.0
    %v63 = vld [vmem:[%s51 + $0x1] sm:$0x1]
    %v64 = vperm.slane %v63, 0
    %v65 = vsub.f32 %v46, %v64
    %v66 = vand.u32 2147483647, %v65
    %67 = vadd.xlane.f32.xlu0 %v66
    %v68 = vpop.xlane.xlu0 %67
    %vm69 = vcmp.eq.s32.totalorder %v48, 1
    %v70 = vsel %vm69, 1, 0
    %v71 = vcvt.s32.f32 %v70
    %v72 = vmul.f32 %v68, %v71
    %v73 = vadd.f32 %v62, %v72
    %v74 = vld [vmem:[%s51 + $0x2] sm:$0x1]
    %v75 = vperm.slane %v74, 0
    %v76 = vsub.f32 %v46, %v75
    %v77 = vand.u32 2147483647, %v76
    %78 = vadd.xlane.f32.xlu0 %v77
    %v79 = vpop.xlane.xlu0 %78
    %vm80 = vcmp.eq.s32.totalorder %v48, 2
    %v81 = vsel %vm80, 1, 0
    %v82 = vcvt.s32.f32 %v81
    %v83 = vmul.f32 %v79, %v82
    %v84 = vadd.f32 %v73, %v83
    %v85 = vld [vmem:[%s51 + $0x3] sm:$0x1]
    %v86 = vperm.slane %v85, 0
    %v87 = vsub.f32 %v46, %v86
    %v88 = vand.u32 2147483647, %v87
    %89 = vadd.xlane.f32.xlu0 %v88
    %v90 = vpop.xlane.xlu0 %89
    %vm91 = vcmp.eq.s32.totalorder %v48, 3
    %v92 = vsel %vm91, 1, 0
    %v93 = vcvt.s32.f32 %v92
    %v94 = vmul.f32 %v90, %v93
    %v95 = vadd.f32 %v84, %v94
    %v96 = vld [vmem:[#allocation7] sm:$0xff]
    %v97 = vadd.f32 %v96, %v95
    %98 = vst [vmem:[#allocation7] sm:$0xff] %v97
    // Predicated region
    $region22: #{tpu_custom_call.1} parent=1 // pred_check
      _
    $region23: #{tpu_custom_call.1} parent=1 // pred_check_branch
      %100 = sbr.rel (0) target = $region25
    $region24: #{tpu_custom_call.1} parent=1 // pred_region
      %102 = vsyncadd [#allocation4], 0
      %s104 = sshll.u32 [#allocation7], 4
      %s105 = int_to_ptr.vmem [resolvable:$true] %s104
      %s106 = sshll.u32 %s2, 4
      %s107 = int_to_ptr.hbm [resolvable:$true] %s106
      %109 = dma.vmem_to_hbm [thread:$0]  %s105, 128, %s107, [#allocation4]
    $region25: #{tpu_custom_call.1} parent=1 // pred_fallthru
      _
    // Predicated region
    $region26: #{tpu_custom_call.1} parent=1 // pred_check
      _
    $region27: #{tpu_custom_call.1} parent=1 // pred_check_branch
      %111 = sbr.rel (0) target = $region29
    $region28: #{tpu_custom_call.1} parent=1 // pred_region
      %113 = dma.done [#allocation4], 128
    $region29: #{tpu_custom_call.1} parent=1 // pred_fallthru
      _
    %114 = vsyncpa [#allocation3], 1
    %115 = vsyncpa [#allocation6], 1
    %116 = vsyncpa [#allocation4], 1

</llo_original>
